<compile_context>
chip_gen: v7x
topology: tpu7x:2x2x1
jax: 0.10.0
libtpu: 0.0.40
codegen_flags: <defaults>
</compile_context>

<pallas_src>
import functools

import jax
import jax.numpy as jnp
from jax.experimental import pallas as pl
from jax.experimental.pallas import tpu as pltpu

# ---- module hyperparameters (from tinyGPT.py) ----
BLOCK_SIZE = 64
N_EMBD = 64
HEAD_SIZE = 16  # typical tinyGPT choice: n_embd // n_head


def head_kernel(x_ref, wq_ref, wk_ref, wv_ref, o_ref):
    """One batch-tile per grid step: full causal single-head attention."""
    bt, T, C = x_ref.shape
    hs = wq_ref.shape[1]
    dt = x_ref.dtype  # compute dtype fed to the MXU (bf16 by default)

    # Fused over the batch tile: M = bt*T rows for the projection matmuls.
    x2 = x_ref[...].reshape(bt * T, C)
    q = jnp.dot(x2, wq_ref[...], preferred_element_type=jnp.float32)  # scale pre-folded
    k = jnp.dot(x2, wk_ref[...], preferred_element_type=jnp.float32)
    v = jnp.dot(x2, wv_ref[...], preferred_element_type=jnp.float32)

    q3 = q.reshape(bt, T, hs)
    k3 = k.reshape(bt, T, hs)
    v3 = v.reshape(bt, T, hs)

    # Attention scores, batched over the batch tile (single MXU dot_general).
    s = jnp.einsum("btd,bsd->bts", q3.astype(dt), k3.astype(dt),
                   preferred_element_type=jnp.float32)          # (bt, T, T) f32

    # Causal mask via in-kernel iota (no tril operand, finite fill -> no NaNs).
    row_ids = jax.lax.broadcasted_iota(jnp.int32, (T, T), 0)
    col_ids = jax.lax.broadcasted_iota(jnp.int32, (T, T), 1)
    causal = (col_ids <= row_ids)[None, :, :]                   # (1, T, T)
    s = jnp.where(causal, s, jnp.float32(-1e30))

    # Numerically-stable softmax (f32 on the VPU; reciprocal on the EUP).
    m = jnp.max(s, axis=-1, keepdims=True)
    e = jnp.exp(s - m)
    denom = jnp.sum(e, axis=-1, keepdims=True)
    p = e * pl.reciprocal(denom, approx=True)

    out = jnp.einsum("bts,bsd->btd", p.astype(dt), v3.astype(dt),
                     preferred_element_type=jnp.float32)        # (bt, T, hs)
    o_ref[...] = out.astype(o_ref.dtype)


def head_attention(x, wq_t, wk_t, wv_t, *, head_size,
                   batch_tile=1, compute_dtype=jnp.bfloat16):
    """x: (B, T, C).  wq_t/wk_t/wv_t: (C, head_size) (nn.Linear weight, transposed)."""
    B, T, C = x.shape
    hs = wq_t.shape[1]
    assert hs == head_size and B % batch_tile == 0

    # Fold the attention scale into Wq once, in f32, then cast for the MXU.
    scale = jnp.float32(head_size) ** -0.5
    wq_s = (wq_t.astype(jnp.float32) * scale).astype(compute_dtype)
    wk_c = wk_t.astype(compute_dtype)
    wv_c = wv_t.astype(compute_dtype)
    x_c = x.astype(compute_dtype)

    grid = (B // batch_tile,)
    return pl.pallas_call(
        head_kernel,
        out_shape=jax.ShapeDtypeStruct((B, T, hs), x.dtype),
        grid_spec=pltpu.PrefetchScalarGridSpec(
            num_scalar_prefetch=0,
            grid=grid,
            in_specs=[
                pl.BlockSpec((batch_tile, T, C), lambda b: (b, 0, 0)),  # x
                pl.BlockSpec((C, hs), lambda b: (0, 0)),                # wq (scaled)
                pl.BlockSpec((C, hs), lambda b: (0, 0)),                # wk
                pl.BlockSpec((C, hs), lambda b: (0, 0)),                # wv
            ],
            out_specs=pl.BlockSpec((batch_tile, T, hs), lambda b: (b, 0, 0)),
        ),
        compiler_params=pltpu.CompilerParams(
            dimension_semantics=("parallel",)),  # batch tiles split across TCs (v7x)
    )(x_c, wq_s, wk_c, wv_c)


def init_params(key):
    """Match nn.Linear(n_embd, head_size, bias=False): weight (hs, C),
    U(-1/sqrt(C), 1/sqrt(C)); returned pre-transposed to (C, hs)."""
    ks = jax.random.split(key, 3)
    bound = 1.0 / (N_EMBD ** 0.5)
    wq = jax.random.uniform(ks[0], (HEAD_SIZE, N_EMBD), jnp.float32, -bound, bound)
    wk = jax.random.uniform(ks[1], (HEAD_SIZE, N_EMBD), jnp.float32, -bound, bound)
    wv = jax.random.uniform(ks[2], (HEAD_SIZE, N_EMBD), jnp.float32, -bound, bound)
    return wq.T, wk.T, wv.T


def reference_head(x, wq_t, wk_t, wv_t, head_size):
    """Pure-JAX f32 reference matching the PyTorch Head.forward."""
    B, T, C = x.shape
    q = x @ wq_t
    k = x @ wk_t
    v = x @ wv_t
    wei = jnp.einsum("btd,bsd->bts", q, k) * head_size ** -0.5
    tril = jnp.tril(jnp.ones((T, T), jnp.float32))
    wei = jnp.where(tril == 0.0, -jnp.inf, wei)
    wei = jax.nn.softmax(wei, axis=-1)
    return jnp.einsum("bts,bsd->btd", wei, v)


if __name__ == "__main__":
    key = jax.random.PRNGKey(0)
    k_x, k_p = jax.random.split(key)

    B, T, C = 2, BLOCK_SIZE, N_EMBD
    x = jax.random.normal(k_x, (B, T, C), jnp.float32)
    wq_t, wk_t, wv_t = init_params(k_p)

    ref = reference_head(x, wq_t, wk_t, wv_t, HEAD_SIZE)

    # bf16 MXU path (default; recommended for v6e/v7x) — loose tolerance.
    out = head_attention(x, wq_t, wk_t, wv_t, head_size=HEAD_SIZE)
    out = jax.block_until_ready(out)
    assert out.shape == (B, T, HEAD_SIZE)
    assert jnp.allclose(out, ref, atol=5e-2, rtol=5e-2)

    # f32 MXU path — tight tolerance sanity check of the kernel structure.
    out_f32 = head_attention(x, wq_t, wk_t, wv_t, head_size=HEAD_SIZE,
                             compute_dtype=jnp.float32)
    out_f32 = jax.block_until_ready(out_f32)
    assert jnp.allclose(out_f32, ref, atol=2e-3, rtol=2e-3)

    print("KERNEL_OK")
</pallas_src>

<mosaic_0001>
module attributes {stable_mosaic.version = 11 : i64} {
  func.func @head_kernel(%arg0: i32, %arg1: memref<1x64x64xbf16, #tpu.memory_space<vmem>>, %arg2: memref<64x16xbf16, #tpu.memory_space<vmem>>, %arg3: memref<64x16xbf16, #tpu.memory_space<vmem>>, %arg4: memref<64x16xbf16, #tpu.memory_space<vmem>>, %arg5: memref<1x64x16xf32, #tpu.memory_space<vmem>>) attributes {dimension_semantics = [#tpu.dimension_semantics<parallel>], iteration_bounds = array<i64: 2>, scalar_prefetch = 0 : i64, scratch_operands = 0 : i64, tpu.core_type = #tpu.core_type<tc>, window_params = [{transform_indices = @transform_0, window_bounds = array<i64: 1, 64, 64>}, {pipeline_mode = #tpu.pipeline_mode<synchronous>, transform_indices = @transform_1, window_bounds = array<i64: 64, 16>}, {pipeline_mode = #tpu.pipeline_mode<synchronous>, transform_indices = @transform_2, window_bounds = array<i64: 64, 16>}, {pipeline_mode = #tpu.pipeline_mode<synchronous>, transform_indices = @transform_3, window_bounds = array<i64: 64, 16>}, {transform_indices = @transform_4, window_bounds = array<i64: 1, 64, 16>}]} {
    %c0 = arith.constant 0 : index
    %c0_0 = arith.constant 0 : index
    %c0_1 = arith.constant 0 : index
    %0 = vector.load %arg1[%c0, %c0_0, %c0_1] : memref<1x64x64xbf16, #tpu.memory_space<vmem>>, vector<1x64x64xbf16>
    %1 = vector.shape_cast %0 : vector<1x64x64xbf16> to vector<64x64xbf16>
    %c0_2 = arith.constant 0 : index
    %c0_3 = arith.constant 0 : index
    %2 = vector.load %arg2[%c0_2, %c0_3] : memref<64x16xbf16, #tpu.memory_space<vmem>>, vector<64x16xbf16>
    %cst = arith.constant dense<0.000000e+00> : vector<64x16xf32>
    %3 = tpu.matmul %1, %2, %cst {dimension_numbers = #tpu.dot_dimension_numbers<[1], [0], [0], [1], [0, 0, 1, 1], [], []>} : vector<64x64xbf16>, vector<64x16xbf16>, vector<64x16xf32> -> vector<64x16xf32>
    %c0_4 = arith.constant 0 : index
    %c0_5 = arith.constant 0 : index
    %4 = vector.load %arg3[%c0_4, %c0_5] : memref<64x16xbf16, #tpu.memory_space<vmem>>, vector<64x16xbf16>
    %cst_6 = arith.constant dense<0.000000e+00> : vector<64x16xf32>
    %5 = tpu.matmul %1, %4, %cst_6 {dimension_numbers = #tpu.dot_dimension_numbers<[1], [0], [0], [1], [0, 0, 1, 1], [], []>} : vector<64x64xbf16>, vector<64x16xbf16>, vector<64x16xf32> -> vector<64x16xf32>
    %c0_7 = arith.constant 0 : index
    %c0_8 = arith.constant 0 : index
    %6 = vector.load %arg4[%c0_7, %c0_8] : memref<64x16xbf16, #tpu.memory_space<vmem>>, vector<64x16xbf16>
    %cst_9 = arith.constant dense<0.000000e+00> : vector<64x16xf32>
    %7 = tpu.matmul %1, %6, %cst_9 {dimension_numbers = #tpu.dot_dimension_numbers<[1], [0], [0], [1], [0, 0, 1, 1], [], []>} : vector<64x64xbf16>, vector<64x16xbf16>, vector<64x16xf32> -> vector<64x16xf32>
    %8 = vector.shape_cast %3 : vector<64x16xf32> to vector<1x64x16xf32>
    %9 = vector.shape_cast %5 : vector<64x16xf32> to vector<1x64x16xf32>
    %10 = vector.shape_cast %7 : vector<64x16xf32> to vector<1x64x16xf32>
    %11 = arith.truncf %8 : vector<1x64x16xf32> to vector<1x64x16xbf16>
    %12 = arith.truncf %9 : vector<1x64x16xf32> to vector<1x64x16xbf16>
    "tpu.trace_start"() <{level = 10 : i32, message = "btd,bsd->bts"}> : () -> ()
    %cst_10 = arith.constant dense<0.000000e+00> : vector<1x64x64xf32>
    %13 = tpu.matmul %11, %12, %cst_10 {dimension_numbers = #tpu.dot_dimension_numbers<[2], [2], [1], [1], [0, 0, 0, 1, 1, 1], [0], [0]>} : vector<1x64x16xbf16>, vector<1x64x16xbf16>, vector<1x64x64xf32> -> vector<1x64x64xf32>
    "tpu.trace_stop"() : () -> ()
    %14 = tpu.iota {dimensions = array<i32: 0>} : vector<64x64xi32>
    %15 = tpu.iota {dimensions = array<i32: 1>} : vector<64x64xi32>
    %16 = arith.cmpi sle, %15, %14 : vector<64x64xi32>
    %17 = vector.shape_cast %16 : vector<64x64xi1> to vector<1x64x64xi1>
    %cst_11 = arith.constant -1.000000e+30 : f32
    %18 = vector.broadcast %cst_11 : f32 to vector<1x64x64xf32>
    %19 = arith.select %17, %13, %18 : vector<1x64x64xi1>, vector<1x64x64xf32>
    %cst_12 = arith.constant dense<0xFF800000> : vector<1x64xf32>
    %20 = vector.multi_reduction <maximumf>, %19, %cst_12 [2] : vector<1x64x64xf32> to vector<1x64xf32>
    %21 = vector.shape_cast %20 : vector<1x64xf32> to vector<1x64x1xf32>
    %22 = vector.broadcast %21 : vector<1x64x1xf32> to vector<1x64x64xf32>
    %23 = arith.subf %19, %22 : vector<1x64x64xf32>
    %24 = math.exp %23 : vector<1x64x64xf32>
    %cst_13 = arith.constant dense<0.000000e+00> : vector<1x64xf32>
    %25 = vector.multi_reduction <add>, %24, %cst_13 [2] : vector<1x64x64xf32> to vector<1x64xf32>
    %26 = vector.shape_cast %25 : vector<1x64xf32> to vector<1x64x1xf32>
    %27 = tpu.reciprocal %26 {approx = true} : vector<1x64x1xf32> -> vector<1x64x1xf32>
    %28 = vector.broadcast %27 : vector<1x64x1xf32> to vector<1x64x64xf32>
    %29 = arith.mulf %24, %28 : vector<1x64x64xf32>
    %30 = arith.truncf %29 : vector<1x64x64xf32> to vector<1x64x64xbf16>
    %31 = arith.truncf %10 : vector<1x64x16xf32> to vector<1x64x16xbf16>
    "tpu.trace_start"() <{level = 10 : i32, message = "bts,bsd->btd"}> : () -> ()
    %cst_14 = arith.constant dense<0.000000e+00> : vector<1x64x16xf32>
    %32 = tpu.matmul %30, %31, %cst_14 {dimension_numbers = #tpu.dot_dimension_numbers<[2], [1], [1], [2], [0, 0, 0, 1, 1, 2], [0], [0]>} : vector<1x64x64xbf16>, vector<1x64x16xbf16>, vector<1x64x16xf32> -> vector<1x64x16xf32>
    "tpu.trace_stop"() : () -> ()
    %c0_15 = arith.constant 0 : index
    %c0_16 = arith.constant 0 : index
    %c0_17 = arith.constant 0 : index
    %33 = vector.load %arg5[%c0_15, %c0_16, %c0_17] : memref<1x64x16xf32, #tpu.memory_space<vmem>>, vector<1x64x16xf32>
    tpu.vector_store %arg5[%c0_15, %c0_16, %c0_17], %32 {strides = array<i32>} : memref<1x64x16xf32, #tpu.memory_space<vmem>>, vector<1x64x16xf32>,
    return
  }
  func.func @transform_0(%arg0: i32) -> (i32, i32, i32) {
    %c0_i32 = arith.constant 0 : i32
    %c0_i32_0 = arith.constant 0 : i32
    %c0_i32_1 = arith.constant 0 : i32
    return %arg0, %c0_i32, %c0_i32_0 : i32, i32, i32
  }
  func.func @transform_1(%arg0: i32) -> (i32, i32) {
    %c0_i32 = arith.constant 0 : i32
    %c0_i32_0 = arith.constant 0 : i32
    %c0_i32_1 = arith.constant 0 : i32
    return %c0_i32, %c0_i32_0 : i32, i32
  }
  func.func @transform_2(%arg0: i32) -> (i32, i32) {
    %c0_i32 = arith.constant 0 : i32
    %c0_i32_0 = arith.constant 0 : i32
    %c0_i32_1 = arith.constant 0 : i32
    return %c0_i32, %c0_i32_0 : i32, i32
  }
  func.func @transform_3(%arg0: i32) -> (i32, i32) {
    %c0_i32 = arith.constant 0 : i32
    %c0_i32_0 = arith.constant 0 : i32
    %c0_i32_1 = arith.constant 0 : i32
    return %c0_i32, %c0_i32_0 : i32, i32
  }
  func.func @transform_4(%arg0: i32) -> (i32, i32, i32) {
    %c0_i32 = arith.constant 0 : i32
    %c0_i32_0 = arith.constant 0 : i32
    %c0_i32_1 = arith.constant 0 : i32
    return %arg0, %c0_i32, %c0_i32_0 : i32, i32, i32
  }
}

</mosaic_0001>

<llo_original>
// kernel: tpu_custom_call.1
$region0: #{tpu_custom_call.1}
  #allocation0 [shape = 'u32[]', space=smem, size = 0x4, offset = 0x4, fixed_abs, tag = 'smem constant byte address 0x4 - core index']
  #allocation1 [shape = 'u32[144,128]{1,0:T(1,128)}', space=vmem, size = 0x12000, scoped, tag = 'internal scratch']
  %s0 = inlined_call_operand.vmem [shape: bf16[2,64,64], index: 0, kind: input, shape index: {}]
  %s1 = inlined_call_operand.vmem [shape: bf16[64,16], index: 1, kind: input, shape index: {}]
  %s2 = inlined_call_operand.vmem [shape: bf16[64,16], index: 2, kind: input, shape index: {}]
  %s3 = inlined_call_operand.vmem [shape: bf16[64,16], index: 3, kind: input, shape index: {}]
  %s4 = inlined_call_operand.vmem [shape: f32[2,64,16], index: 4, kind: output, shape index: {}]
  %s5 = sld [smem:[#allocation0]]
  $region49: #{tpu_custom_call.1} parent=0
    _
  %s7 = ssub.s32 1, %s5
  %s8 = scalar_select 0, %s7, %s5
  loop: start=0, step=1, limit=4
  $region2: #{tpu_custom_call.1} parent=0 // loop_pre_header
    _
  $region3: #{tpu_custom_call.1} parent=0 // loop_header
    %s10 = sphi 0, %s14
    %p11 = scmp.ge.s32.totalorder %s10, 4
    %s20 = sphi 0, %s22
    %s23 = sphi 0, %s20
    %s24 = sphi 0, %s23
    %s40 = sphi 0, %s24
    %s44 = sphi 0, %s44
    %s46 = sphi 0, %s44
    %s47 = sphi 0, %s46
    %s61 = sphi 0, %s47
    %s65 = sphi 0, %s65
    %s67 = sphi 0, %s65
    %s68 = sphi 0, %s67
    %s82 = sphi 0, %s68
    %s86 = sphi 0, %s86
    %s88 = sphi 0, %s86
    %s89 = sphi 0, %s88
    %s103 = sphi 0, %s89
    %s109 = sphi 0, %s111
    %s112 = sphi 0, %s109
    %s113 = sphi 0, %s112
    %s129 = sphi 0, %s113
  $region4: #{tpu_custom_call.1} parent=0 // loop_header_branch
    %13 = sbr.rel (%p11) target = $region8
  $region5: #{tpu_custom_call.1} parent=0 // loop_body
    %s15 = ssub.s32 %s10, 1
    %s16 = ssub.s32 %s10, 2
    %s17 = sadd.s32 %s10, 1
    %s18 = ssub.s32 %s10, %s17
    %p19 = scmp.eq.s32.totalorder %s18, 0
    %s21 = sadd.s32 %s20, 1
    %s22 = scalar_select %p19, %s20, %s21
    %p25 = pneg %p19
    %p26 = scmp.eq.s32.totalorder %s10, 1
    %p27 = por %p25, %p26
    %p28 = scmp.ne.s32.totalorder %s20, %s23
    %p29 = scmp.eq.s32.totalorder %s10, 0
    %p30 = por %p28, %p29
    %p31 = scmp.ne.s32.totalorder %s20, %s23
    %p32 = scmp.eq.s32.totalorder %s15, 1
    %p33 = por %p31, %p32
    %p34 = scmp.ne.s32.totalorder %s23, %s24
    %p35 = scmp.eq.s32.totalorder %s15, 0
    %p36 = por %p34, %p35
    %p37 = scmp.ne.s32.totalorder %s23, %s24
    %p38 = scmp.eq.s32.totalorder %s16, 1
    %p39 = por %p37, %p38
    %p41 = scmp.ne.s32.totalorder %s24, %s40
    %p42 = scmp.eq.s32.totalorder %s16, 0
    %p43 = por %p41, %p42
    %s45 = sadd.s32 %s44, 1
    %p48 = scmp.eq.s32.totalorder %s10, 1
    %p49 = scmp.ne.s32.totalorder %s44, %s46
    %p50 = scmp.eq.s32.totalorder %s10, 0
    %p51 = por %p49, %p50
    %p52 = scmp.ne.s32.totalorder %s44, %s46
    %p53 = scmp.eq.s32.totalorder %s15, 1
    %p54 = por %p52, %p53
    %p55 = scmp.ne.s32.totalorder %s46, %s47
    %p56 = scmp.eq.s32.totalorder %s15, 0
    %p57 = por %p55, %p56
    %p58 = scmp.ne.s32.totalorder %s46, %s47
    %p59 = scmp.eq.s32.totalorder %s16, 1
    %p60 = por %p58, %p59
    %p62 = scmp.ne.s32.totalorder %s47, %s61
    %p63 = scmp.eq.s32.totalorder %s16, 0
    %p64 = por %p62, %p63
    %s66 = sadd.s32 %s65, 1
    %p69 = scmp.eq.s32.totalorder %s10, 1
    %p70 = scmp.ne.s32.totalorder %s65, %s67
    %p71 = scmp.eq.s32.totalorder %s10, 0
    %p72 = por %p70, %p71
    %p73 = scmp.ne.s32.totalorder %s65, %s67
    %p74 = scmp.eq.s32.totalorder %s15, 1
    %p75 = por %p73, %p74
    %p76 = scmp.ne.s32.totalorder %s67, %s68
    %p77 = scmp.eq.s32.totalorder %s15, 0
    %p78 = por %p76, %p77
    %p79 = scmp.ne.s32.totalorder %s67, %s68
    %p80 = scmp.eq.s32.totalorder %s16, 1
    %p81 = por %p79, %p80
    %p83 = scmp.ne.s32.totalorder %s68, %s82
    %p84 = scmp.eq.s32.totalorder %s16, 0
    %p85 = por %p83, %p84
    %s87 = sadd.s32 %s86, 1
    %p90 = scmp.eq.s32.totalorder %s10, 1
    %p91 = scmp.ne.s32.totalorder %s86, %s88
    %p92 = scmp.eq.s32.totalorder %s10, 0
    %p93 = por %p91, %p92
    %p94 = scmp.ne.s32.totalorder %s86, %s88
    %p95 = scmp.eq.s32.totalorder %s15, 1
    %p96 = por %p94, %p95
    %p97 = scmp.ne.s32.totalorder %s88, %s89
    %p98 = scmp.eq.s32.totalorder %s15, 0
    %p99 = por %p97, %p98
    %p100 = scmp.ne.s32.totalorder %s88, %s89
    %p101 = scmp.eq.s32.totalorder %s16, 1
    %p102 = por %p100, %p101
    %p104 = scmp.ne.s32.totalorder %s89, %s103
    %p105 = scmp.eq.s32.totalorder %s16, 0
    %p106 = por %p104, %p105
    %s107 = ssub.s32 %s10, %s17
    %p108 = scmp.eq.s32.totalorder %s107, 0
    %s110 = sadd.s32 %s109, 1
    %s111 = scalar_select %p108, %s109, %s110
    %p114 = pneg %p108
    %p115 = scmp.eq.s32.totalorder %s10, 1
    %p116 = por %p114, %p115
    %p117 = scmp.ne.s32.totalorder %s109, %s112
    %p118 = scmp.eq.s32.totalorder %s10, 0
    %p119 = por %p117, %p118
    %p120 = scmp.ne.s32.totalorder %s109, %s112
    %p121 = scmp.eq.s32.totalorder %s15, 1
    %p122 = por %p120, %p121
    %p123 = scmp.ne.s32.totalorder %s112, %s113
    %p124 = scmp.eq.s32.totalorder %s15, 0
    %p125 = por %p123, %p124
    %p126 = scmp.ne.s32.totalorder %s112, %s113
    %p127 = scmp.eq.s32.totalorder %s16, 1
    %p128 = por %p126, %p127
    %p130 = scmp.ne.s32.totalorder %s113, %s129
    %p131 = scmp.eq.s32.totalorder %s16, 0
    %p132 = por %p130, %p131
    %p133 = scmp.le.s32.totalorder 1, %s10
    %p134 = scmp.lt.s32.totalorder %s10, 3
    %p135 = pnand %p133, %p134
    %p136 = pneg %p135
    // Predicated region
    $region9: #{tpu_custom_call.1} parent=5 // pred_check
      _
    $region10: #{tpu_custom_call.1} parent=5 // pred_check_branch
      %138 = sbr.rel (%p135) target = $region12
    $region11: #{tpu_custom_call.1} parent=5 // pred_region
      %s139 = ssub.s32 %s10, 1
      // Predicated region
      $region13: #{tpu_custom_call.1} parent=11 // pred_check
        %p140 = pneg %p57
      $region14: #{tpu_custom_call.1} parent=11 // pred_check_branch
        %142 = sbr.rel (%p140) target = $region16
      $region15: #{tpu_custom_call.1} parent=11 // pred_region
        _
      $region16: #{tpu_custom_call.1} parent=11 // pred_fallthru
        _
      // Predicated region
      $region17: #{tpu_custom_call.1} parent=11 // pred_check
        %p143 = pneg %p78
      $region18: #{tpu_custom_call.1} parent=11 // pred_check_branch
        %145 = sbr.rel (%p143) target = $region20
      $region19: #{tpu_custom_call.1} parent=11 // pred_region
        _
      $region20: #{tpu_custom_call.1} parent=11 // pred_fallthru
        _
      // Predicated region
      $region21: #{tpu_custom_call.1} parent=11 // pred_check
        %p146 = pneg %p99
      $region22: #{tpu_custom_call.1} parent=11 // pred_check_branch
        %148 = sbr.rel (%p146) target = $region24
      $region23: #{tpu_custom_call.1} parent=11 // pred_region
        _
      $region24: #{tpu_custom_call.1} parent=11 // pred_fallthru
        _
    $region12: #{tpu_custom_call.1} parent=5 // pred_fallthru
      _
    %p149 = scmp.lt.s32.totalorder %s10, 2
    // Predicated region
    $region25: #{tpu_custom_call.1} parent=5 // pred_check
      %p150 = pneg %p149
    $region26: #{tpu_custom_call.1} parent=5 // pred_check_branch
      %152 = sbr.rel (%p150) target = $region28
    $region27: #{tpu_custom_call.1} parent=5 // pred_region
      // Predicated region
      $region29: #{tpu_custom_call.1} parent=27 // pred_check
        %p153 = pneg %p30
      $region30: #{tpu_custom_call.1} parent=27 // pred_check_branch
        %155 = sbr.rel (%p153) target = $region32
      $region31: #{tpu_custom_call.1} parent=27 // pred_region
        %p156 = scmp.lt.s32.totalorder %s10, 1
        %s157 = scalar_select %p156, %s10, 1
        %s158 = smul.addr %s157, 8
        %s159 = smul.addr %s158, 4
        %s160 = scalar_lea.vmem %s0, %s159
      $region32: #{tpu_custom_call.1} parent=27 // pred_fallthru
        _
    $region28: #{tpu_custom_call.1} parent=5 // pred_fallthru
      _
    %p161 = scmp.le.s32.totalorder 1, %s10
    %p162 = scmp.lt.s32.totalorder %s10, 3
    %p163 = pnand %p161, %p162
    %p164 = pneg %p163
    // Predicated region
    $region33: #{tpu_custom_call.1} parent=5 // pred_check
      _
    $region34: #{tpu_custom_call.1} parent=5 // pred_check_branch
      %166 = sbr.rel (%p163) target = $region36
    $region35: #{tpu_custom_call.1} parent=5 // pred_region
      %s167 = ssub.s32 %s10, 1
      %p168 = scmp.lt.s32.totalorder %s15, 1
      %s169 = scalar_select %p168, %s15, 1
      %s170 = smul.addr %s169, 8
      %s171 = smul.addr %s170, 4
      %s172 = scalar_lea.vmem %s0, %s171
      %p173 = pneg %p36
      %p174 = pneg %p33
      %p175 = pneg %p57
      %p176 = pneg %p54
      %p177 = pneg %p78
      %p178 = pneg %p75
      %p179 = pneg %p99
      %p180 = pneg %p96
      %p181 = pneg %p125
      %p182 = pneg %p122
      %p183 = scmp.lt.s32.totalorder %s15, 1
      %s184 = scalar_select %p183, %s15, 1
      %s185 = smul.addr %s184, 8
      %s186 = smul.addr %s185, 8
      %s187 = scalar_lea.vmem %s4, %s186
      %p188 = scmp.lt.s32.totalorder %s15, 1
      %s189 = scalar_select %p188, %s15, 1
      %s190 = smul.addr %s189, 8
      %s191 = smul.addr %s190, 4
      %s192 = scalar_lea.vmem %s0, %s191
      %p193 = scmp.lt.s32.totalorder %s15, 1
      %s194 = scalar_select %p193, %s15, 1
      %s195 = smul.addr %s194, 8
      %s196 = smul.addr %s195, 8
      %s197 = scalar_lea.vmem %s4, %s196
      %v199 = vld [vmem:[%s192] sm:$0xf]
      %v200 = vld [vmem:[%s192 + $0x4] sm:$0xf]
      %v201 = vld [vmem:[%s192 + $0x8] sm:$0xf]
      %v202 = vld [vmem:[%s192 + $0xc] sm:$0xf]
      %v203 = vld [vmem:[%s192 + $0x10] sm:$0xf]
      %v204 = vld [vmem:[%s192 + $0x14] sm:$0xf]
      %v205 = vld [vmem:[%s192 + $0x18] sm:$0xf]
      %v206 = vld [vmem:[%s192 + $0x1c] sm:$0xf]
      %v207 = vld [vmem:[%s1] sm:$0xf]
      %v208 = vld [vmem:[%s1 + $0x4] sm:$0xf]
      %v209 = vld [vmem:[%s1 + $0x8] sm:$0xf]
      %v210 = vld [vmem:[%s1 + $0xc] sm:$0xf]
      %v211 = vld [vmem:[%s1 + $0x10] sm:$0xf]
      %v212 = vld [vmem:[%s1 + $0x14] sm:$0xf]
      %v213 = vld [vmem:[%s1 + $0x18] sm:$0xf]
      %v214 = vld [vmem:[%s1 + $0x1c] sm:$0xf]
      %v223 = vunpack.c.l.b16 %v199
      %v224 = vunpack.c.l.b16 %v200
      %v225 = vunpack.c.l.b16 %v201
      %v226 = vunpack.c.l.b16 %v202
      %v227 = vunpack.c.l.b16 %v203
      %v228 = vunpack.c.l.b16 %v204
      %v229 = vunpack.c.l.b16 %v205
      %v230 = vunpack.c.l.b16 %v206
      %v231 = vpack.c.b16 %v224, %v223
      %v232 = vpack.c.b16 %v226, %v225
      %v233 = vpack.c.b16 %v228, %v227
      %v234 = vpack.c.b16 %v230, %v229
      %v243 = vunpack.c.l.b16 %v207
      %v244 = vunpack.c.l.b16 %v208
      %v245 = vunpack.c.l.b16 %v209
      %v246 = vunpack.c.l.b16 %v210
      %v247 = vunpack.c.l.b16 %v211
      %v248 = vunpack.c.l.b16 %v212
      %v249 = vunpack.c.l.b16 %v213
      %v250 = vunpack.c.l.b16 %v214
      %v251 = vpack.c.b16 %v244, %v243
      %v252 = vpack.c.b16 %v246, %v245
      %v253 = vpack.c.b16 %v248, %v247
      %v254 = vpack.c.b16 %v250, %v249
      %vm259 = vcmask 523264
      %v261 = vsel %vm259, %v231, 0
      %v264 = vsel %vm259, %v232, 0
      %v267 = vsel %vm259, %v233, 0
      %v270 = vsel %vm259, %v234, 0
      %272 = vmatprep.subr.bf16.mxu0 0
      %273 = vmatpush1.bf16.msra.mxu0 %v251
      %274 = vmatprep.subr.bf16.mxu0 0
      %275 = vmatpush1.bf16.msra.mxu0 %v252
      %276 = vmatprep.subr.bf16.mxu0 0
      %277 = vmatpush1.bf16.msra.mxu0 %v253
      %278 = vmatprep.subr.bf16.mxu0 0
      %279 = vmatpush1.bf16.msra.mxu0 %v254
      %280 = vmatprep.subr.bf16.mxu0 0
      %281 = vmatpush1.bf16.msra.mxu0 0
      %282 = vmatprep.subr.bf16.mxu0 0
      %283 = vmatpush1.bf16.msra.mxu0 0
      %284 = vmatprep.subr.bf16.mxu0 0
      %285 = vmatpush1.bf16.msra.mxu0 0
      %286 = vmatprep.subr.bf16.mxu0 0
      %287 = vmatpush1.bf16.msra.mxu0 0
      %288 = vmatprep.subr.bf16.mxu0 0
      %289 = vmatpush1.bf16.msra.mxu0 0
      %290 = vmatprep.subr.bf16.mxu0 0
      %291 = vmatpush1.bf16.msra.mxu0 0
      %292 = vmatprep.subr.bf16.mxu0 0
      %293 = vmatpush1.bf16.msra.mxu0 0
      %294 = vmatprep.subr.bf16.mxu0 0
      %295 = vmatpush1.bf16.msra.mxu0 0
      %296 = vmatprep.subr.bf16.mxu0 0
      %297 = vmatpush1.bf16.msra.mxu0 0
      %298 = vmatprep.subr.bf16.mxu0 0
      %299 = vmatpush1.bf16.msra.mxu0 0
      %300 = vmatprep.subr.bf16.mxu0 0
      %301 = vmatpush1.bf16.msra.mxu0 0
      %302 = vmatprep.subr.bf16.mxu0 0
      %303 = vmatpush1.bf16.msra.mxu0 0
      %304 = vmatprep.mubr.bf16.mxu0 0
      %305 = vmatmul.mubr.bf16.gmra.mrb[0].mxu0 %v261
      %v306 = vpop.f32.mrb[0].mxu0
      %v307 = vadd.f32 0.0, %v306
      %v308 = vpop.f32.mrb[0].mxu0
      %v309 = vpop.f32.mrb[0].mxu0
      %v310 = vadd.f32 0.0, %v309
      %v311 = vpop.f32.mrb[0].mxu0
      %312 = vmatprep.mubr.bf16.mxu0 0
      %313 = vmatmul.mubr.bf16.gmra.mrb[0].mxu0 %v264
      %v314 = vpop.f32.mrb[0].mxu0
      %v315 = vadd.f32 0.0, %v314
      %v316 = vpop.f32.mrb[0].mxu0
      %v317 = vpop.f32.mrb[0].mxu0
      %v318 = vadd.f32 0.0, %v317
      %v319 = vpop.f32.mrb[0].mxu0
      %320 = vmatprep.mubr.bf16.mxu0 0
      %321 = vmatmul.mubr.bf16.gmra.mrb[0].mxu0 %v267
      %v322 = vpop.f32.mrb[0].mxu0
      %v323 = vadd.f32 0.0, %v322
      %v324 = vpop.f32.mrb[0].mxu0
      %v325 = vpop.f32.mrb[0].mxu0
      %v326 = vadd.f32 0.0, %v325
      %v327 = vpop.f32.mrb[0].mxu0
      %328 = vmatprep.mubr.bf16.mxu0 0
      %329 = vmatmul.mubr.bf16.gmra.mrb[0].mxu0 %v270
      %v330 = vpop.f32.mrb[0].mxu0
      %v331 = vadd.f32 0.0, %v330
      %v332 = vpop.f32.mrb[0].mxu0
      %v333 = vpop.f32.mrb[0].mxu0
      %v334 = vadd.f32 0.0, %v333
      %v335 = vpop.f32.mrb[0].mxu0
      %336 = vdwg.mxu0
      %v337 = vld [vmem:[%s2] sm:$0xf]
      %v338 = vld [vmem:[%s2 + $0x4] sm:$0xf]
      %v339 = vld [vmem:[%s2 + $0x8] sm:$0xf]
      %v340 = vld [vmem:[%s2 + $0xc] sm:$0xf]
      %v341 = vld [vmem:[%s2 + $0x10] sm:$0xf]
      %v342 = vld [vmem:[%s2 + $0x14] sm:$0xf]
      %v343 = vld [vmem:[%s2 + $0x18] sm:$0xf]
      %v344 = vld [vmem:[%s2 + $0x1c] sm:$0xf]
      %v353 = vunpack.c.l.b16 %v337
      %v354 = vunpack.c.l.b16 %v338
      %v355 = vunpack.c.l.b16 %v339
      %v356 = vunpack.c.l.b16 %v340
      %v357 = vunpack.c.l.b16 %v341
      %v358 = vunpack.c.l.b16 %v342
      %v359 = vunpack.c.l.b16 %v343
      %v360 = vunpack.c.l.b16 %v344
      %v361 = vpack.c.b16 %v354, %v353
      %v362 = vpack.c.b16 %v356, %v355
      %v363 = vpack.c.b16 %v358, %v357
      %v364 = vpack.c.b16 %v360, %v359
      %369 = vmatprep.subr.bf16.mxu0 0
      %370 = vmatpush1.bf16.msra.mxu0 %v361
      %371 = vmatprep.subr.bf16.mxu0 0
      %372 = vmatpush1.bf16.msra.mxu0 %v362
      %373 = vmatprep.subr.bf16.mxu0 0
      %374 = vmatpush1.bf16.msra.mxu0 %v363
      %375 = vmatprep.subr.bf16.mxu0 0
      %376 = vmatpush1.bf16.msra.mxu0 %v364
      %377 = vmatprep.subr.bf16.mxu0 0
      %378 = vmatpush1.bf16.msra.mxu0 0
      %379 = vmatprep.subr.bf16.mxu0 0
      %380 = vmatpush1.bf16.msra.mxu0 0
      %381 = vmatprep.subr.bf16.mxu0 0
      %382 = vmatpush1.bf16.msra.mxu0 0
      %383 = vmatprep.subr.bf16.mxu0 0
      %384 = vmatpush1.bf16.msra.mxu0 0
      %385 = vmatprep.subr.bf16.mxu0 0
      %386 = vmatpush1.bf16.msra.mxu0 0
      %387 = vmatprep.subr.bf16.mxu0 0
      %388 = vmatpush1.bf16.msra.mxu0 0
      %389 = vmatprep.subr.bf16.mxu0 0
      %390 = vmatpush1.bf16.msra.mxu0 0
      %391 = vmatprep.subr.bf16.mxu0 0
      %392 = vmatpush1.bf16.msra.mxu0 0
      %393 = vmatprep.subr.bf16.mxu0 0
      %394 = vmatpush1.bf16.msra.mxu0 0
      %395 = vmatprep.subr.bf16.mxu0 0
      %396 = vmatpush1.bf16.msra.mxu0 0
      %397 = vmatprep.subr.bf16.mxu0 0
      %398 = vmatpush1.bf16.msra.mxu0 0
      %399 = vmatprep.subr.bf16.mxu0 0
      %400 = vmatpush1.bf16.msra.mxu0 0
      %401 = vmatprep.mubr.bf16.mxu0 0
      %402 = vmatmul.mubr.bf16.gmra.mrb[0].mxu0 %v261
      %v403 = vpop.f32.mrb[0].mxu0
      %v404 = vadd.f32 0.0, %v403
      %v405 = vpop.f32.mrb[0].mxu0
      %v406 = vpop.f32.mrb[0].mxu0
      %v407 = vadd.f32 0.0, %v406
      %v408 = vpop.f32.mrb[0].mxu0
      %409 = vmatprep.mubr.bf16.mxu0 0
      %410 = vmatmul.mubr.bf16.gmra.mrb[0].mxu0 %v264
      %v411 = vpop.f32.mrb[0].mxu0
      %v412 = vadd.f32 0.0, %v411
      %v413 = vpop.f32.mrb[0].mxu0
      %v414 = vpop.f32.mrb[0].mxu0
      %v415 = vadd.f32 0.0, %v414
      %v416 = vpop.f32.mrb[0].mxu0
      %417 = vmatprep.mubr.bf16.mxu0 0
      %418 = vmatmul.mubr.bf16.gmra.mrb[0].mxu0 %v267
      %v419 = vpop.f32.mrb[0].mxu0
      %v420 = vadd.f32 0.0, %v419
      %v421 = vpop.f32.mrb[0].mxu0
      %v422 = vpop.f32.mrb[0].mxu0
      %v423 = vadd.f32 0.0, %v422
      %v424 = vpop.f32.mrb[0].mxu0
      %425 = vmatprep.mubr.bf16.mxu0 0
      %426 = vmatmul.mubr.bf16.gmra.mrb[0].mxu0 %v270
      %v427 = vpop.f32.mrb[0].mxu0
      %v428 = vadd.f32 0.0, %v427
      %v429 = vpop.f32.mrb[0].mxu0
      %v430 = vpop.f32.mrb[0].mxu0
      %v431 = vadd.f32 0.0, %v430
      %v432 = vpop.f32.mrb[0].mxu0
      %433 = vdwg.mxu0
      %v434 = vld [vmem:[%s3] sm:$0xf]
      %v435 = vld [vmem:[%s3 + $0x4] sm:$0xf]
      %v436 = vld [vmem:[%s3 + $0x8] sm:$0xf]
      %v437 = vld [vmem:[%s3 + $0xc] sm:$0xf]
      %v438 = vld [vmem:[%s3 + $0x10] sm:$0xf]
      %v439 = vld [vmem:[%s3 + $0x14] sm:$0xf]
      %v440 = vld [vmem:[%s3 + $0x18] sm:$0xf]
      %v441 = vld [vmem:[%s3 + $0x1c] sm:$0xf]
      %v450 = vunpack.c.l.b16 %v434
      %v451 = vunpack.c.l.b16 %v435
      %v452 = vunpack.c.l.b16 %v436
      %v453 = vunpack.c.l.b16 %v437
      %v454 = vunpack.c.l.b16 %v438
      %v455 = vunpack.c.l.b16 %v439
      %v456 = vunpack.c.l.b16 %v440
      %v457 = vunpack.c.l.b16 %v441
      %v458 = vpack.c.b16 %v451, %v450
      %v459 = vpack.c.b16 %v453, %v452
      %v460 = vpack.c.b16 %v455, %v454
      %v461 = vpack.c.b16 %v457, %v456
      %466 = vmatprep.subr.bf16.mxu0 0
      %467 = vmatpush1.bf16.msra.mxu0 %v458
      %468 = vmatprep.subr.bf16.mxu0 0
      %469 = vmatpush1.bf16.msra.mxu0 %v459
      %470 = vmatprep.subr.bf16.mxu0 0
      %471 = vmatpush1.bf16.msra.mxu0 %v460
      %472 = vmatprep.subr.bf16.mxu0 0
      %473 = vmatpush1.bf16.msra.mxu0 %v461
      %474 = vmatprep.subr.bf16.mxu0 0
      %475 = vmatpush1.bf16.msra.mxu0 0
      %476 = vmatprep.subr.bf16.mxu0 0
      %477 = vmatpush1.bf16.msra.mxu0 0
      %478 = vmatprep.subr.bf16.mxu0 0
      %479 = vmatpush1.bf16.msra.mxu0 0
      %480 = vmatprep.subr.bf16.mxu0 0
      %481 = vmatpush1.bf16.msra.mxu0 0
      %482 = vmatprep.subr.bf16.mxu0 0
      %483 = vmatpush1.bf16.msra.mxu0 0
      %484 = vmatprep.subr.bf16.mxu0 0
      %485 = vmatpush1.bf16.msra.mxu0 0
      %486 = vmatprep.subr.bf16.mxu0 0
      %487 = vmatpush1.bf16.msra.mxu0 0
      %488 = vmatprep.subr.bf16.mxu0 0
      %489 = vmatpush1.bf16.msra.mxu0 0
      %490 = vmatprep.subr.bf16.mxu0 0
      %491 = vmatpush1.bf16.msra.mxu0 0
      %492 = vmatprep.subr.bf16.mxu0 0
      %493 = vmatpush1.bf16.msra.mxu0 0
      %494 = vmatprep.subr.bf16.mxu0 0
      %495 = vmatpush1.bf16.msra.mxu0 0
      %496 = vmatprep.subr.bf16.mxu0 0
      %497 = vmatpush1.bf16.msra.mxu0 0
      %498 = vmatprep.mubr.bf16.mxu0 0
      %499 = vmatmul.mubr.bf16.gmra.mrb[0].mxu0 %v261
      %v500 = vpop.f32.mrb[0].mxu0
      %v501 = vadd.f32 0.0, %v500
      %v502 = vpop.f32.mrb[0].mxu0
      %v503 = vpop.f32.mrb[0].mxu0
      %v504 = vadd.f32 0.0, %v503
      %v505 = vpop.f32.mrb[0].mxu0
      %506 = vmatprep.mubr.bf16.mxu0 0
      %507 = vmatmul.mubr.bf16.gmra.mrb[0].mxu0 %v264
      %v508 = vpop.f32.mrb[0].mxu0
      %v509 = vadd.f32 0.0, %v508
      %v510 = vpop.f32.mrb[0].mxu0
      %v511 = vpop.f32.mrb[0].mxu0
      %v512 = vadd.f32 0.0, %v511
      %v513 = vpop.f32.mrb[0].mxu0
      %514 = vmatprep.mubr.bf16.mxu0 0
      %515 = vmatmul.mubr.bf16.gmra.mrb[0].mxu0 %v267
      %v516 = vpop.f32.mrb[0].mxu0
      %v517 = vadd.f32 0.0, %v516
      %v518 = vpop.f32.mrb[0].mxu0
      %v519 = vpop.f32.mrb[0].mxu0
      %v520 = vadd.f32 0.0, %v519
      %v521 = vpop.f32.mrb[0].mxu0
      %522 = vmatprep.mubr.bf16.mxu0 0
      %523 = vmatmul.mubr.bf16.gmra.mrb[0].mxu0 %v270
      %v524 = vpop.f32.mrb[0].mxu0
      %v525 = vadd.f32 0.0, %v524
      %v526 = vpop.f32.mrb[0].mxu0
      %v527 = vpop.f32.mrb[0].mxu0
      %v528 = vadd.f32 0.0, %v527
      %v529 = vpop.f32.mrb[0].mxu0
      %530 = vdwg.mxu0
      %v531 = vpack.c.bf16 %v310, %v307
      %v532 = vpack.c.bf16 %v318, %v315
      %v533 = vpack.c.bf16 %v326, %v323
      %v534 = vpack.c.bf16 %v334, %v331
      %v535 = vpack.c.bf16 %v407, %v404
      %v536 = vpack.c.bf16 %v415, %v412
      %v537 = vpack.c.bf16 %v423, %v420
      %v538 = vpack.c.bf16 %v431, %v428
      %vm539 = vcmask 130048
      %v541 = vsel %vm539, %v531, 0
      %v544 = vsel %vm539, %v532, 0
      %v547 = vsel %vm539, %v533, 0
      %v550 = vsel %vm539, %v534, 0
      %v553 = vsel %vm539, %v535, 0
      %v556 = vsel %vm539, %v536, 0
      %v559 = vsel %vm539, %v537, 0
      %v562 = vsel %vm539, %v538, 0
      %564 = vmatprep.subr.bf16.mxu0 0
      %565 = vmatpush1.bf16.xpose.msra.mxu0 %v553
      %566 = vmatprep.subr.bf16.mxu0 0
      %567 = vmatpush1.bf16.xpose.msra.mxu0 %v556
      %568 = vmatprep.subr.bf16.mxu0 0
      %569 = vmatpush1.bf16.xpose.msra.mxu0 %v559
      %570 = vmatprep.subr.bf16.mxu0 0
      %571 = vmatpush1.bf16.xpose.msra.mxu0 %v562
      %572 = vmatprep.subr.bf16.mxu0 0
      %573 = vmatpush1.bf16.xpose.msra.mxu0 0
      %574 = vmatprep.subr.bf16.mxu0 0
      %575 = vmatpush1.bf16.xpose.msra.mxu0 0
      %576 = vmatprep.subr.bf16.mxu0 0
      %577 = vmatpush1.bf16.xpose.msra.mxu0 0
      %578 = vmatprep.subr.bf16.mxu0 0
      %579 = vmatpush1.bf16.xpose.msra.mxu0 0
      %580 = vmatprep.subr.bf16.mxu0 0
      %581 = vmatpush1.bf16.xpose.msra.mxu0 0
      %582 = vmatprep.subr.bf16.mxu0 0
      %583 = vmatpush1.bf16.xpose.msra.mxu0 0
      %584 = vmatprep.subr.bf16.mxu0 0
      %585 = vmatpush1.bf16.xpose.msra.mxu0 0
      %586 = vmatprep.subr.bf16.mxu0 0
      %587 = vmatpush1.bf16.xpose.msra.mxu0 0
      %588 = vmatprep.subr.bf16.mxu0 0
      %589 = vmatpush1.bf16.xpose.msra.mxu0 0
      %590 = vmatprep.subr.bf16.mxu0 0
      %591 = vmatpush1.bf16.xpose.msra.mxu0 0
      %592 = vmatprep.subr.bf16.mxu0 0
      %593 = vmatpush1.bf16.xpose.msra.mxu0 0
      %594 = vmatprep.subr.bf16.mxu0 0
      %595 = vmatpush1.bf16.xpose.msra.mxu0 0
      %596 = vmatprep.mubr.bf16.mxu0 0
      %597 = vmatmul.mubr.bf16.gmra.mrb[0].mxu0 %v541
      %v598 = vpop.f32.mrb[0].mxu0
      %v599 = vadd.f32 0.0, %v598
      %v600 = vpop.f32.mrb[0].mxu0
      %v601 = vpop.f32.mrb[0].mxu0
      %v602 = vadd.f32 0.0, %v601
      %v603 = vpop.f32.mrb[0].mxu0
      %604 = vmatprep.mubr.bf16.mxu0 0
      %605 = vmatmul.mubr.bf16.gmra.mrb[0].mxu0 %v544
      %v606 = vpop.f32.mrb[0].mxu0
      %v607 = vadd.f32 0.0, %v606
      %v608 = vpop.f32.mrb[0].mxu0
      %v609 = vpop.f32.mrb[0].mxu0
      %v610 = vadd.f32 0.0, %v609
      %v611 = vpop.f32.mrb[0].mxu0
      %612 = vmatprep.mubr.bf16.mxu0 0
      %613 = vmatmul.mubr.bf16.gmra.mrb[0].mxu0 %v547
      %v614 = vpop.f32.mrb[0].mxu0
      %v615 = vadd.f32 0.0, %v614
      %v616 = vpop.f32.mrb[0].mxu0
      %v617 = vpop.f32.mrb[0].mxu0
      %v618 = vadd.f32 0.0, %v617
      %v619 = vpop.f32.mrb[0].mxu0
      %620 = vmatprep.mubr.bf16.mxu0 0
      %621 = vmatmul.mubr.bf16.gmra.mrb[0].mxu0 %v550
      %v622 = vpop.f32.mrb[0].mxu0
      %v623 = vadd.f32 0.0, %v622
      %v624 = vpop.f32.mrb[0].mxu0
      %v625 = vpop.f32.mrb[0].mxu0
      %v626 = vadd.f32 0.0, %v625
      %v627 = vpop.f32.mrb[0].mxu0
      %628 = vdwg.mxu0
      %v629 = vlaneseq
      %v630 = vshrl.u32 %v629, 7
      %v631 = vadd.s32 %v630, 8
      %v632 = vadd.s32 %v630, 16
      %v633 = vadd.s32 %v630, 24
      %v634 = vadd.s32 %v630, 32
      %v635 = vadd.s32 %v630, 40
      %v636 = vadd.s32 %v630, 48
      %v637 = vadd.s32 %v630, 56
      %v638 = vlaneseq
      %v639 = vand.u32 %v638, 127
      %vm640 = vcmp.le.s32.totalorder %v639, %v630
      %vm641 = vcmp.le.s32.totalorder %v639, %v631
      %vm642 = vcmp.le.s32.totalorder %v639, %v632
      %vm643 = vcmp.le.s32.totalorder %v639, %v633
      %vm644 = vcmp.le.s32.totalorder %v639, %v634
      %vm645 = vcmp.le.s32.totalorder %v639, %v635
      %vm646 = vcmp.le.s32.totalorder %v639, %v636
      %vm647 = vcmp.le.s32.totalorder %v639, %v637
      %v648 = vsel %vm640, %v599, -1e+30
      %v649 = vsel %vm641, %v602, -1e+30
      %v650 = vsel %vm642, %v607, -1e+30
      %v651 = vsel %vm643, %v610, -1e+30
      %v652 = vsel %vm644, %v615, -1e+30
      %v653 = vsel %vm645, %v618, -1e+30
      %v654 = vsel %vm646, %v623, -1e+30
      %v655 = vsel %vm647, %v626, -1e+30
      %v656 = vsel %vm259, %v648, -inf
      %657 = vmax.xlane.f32.xlu0 %v656
      %v658 = vpop.xlane.xlu0 %657
      %v659 = vsel %vm259, %v649, -inf
      %660 = vmax.xlane.f32.xlu0 %v659
      %v661 = vpop.xlane.xlu0 %660
      %v662 = vsel %vm259, %v650, -inf
      %663 = vmax.xlane.f32.xlu0 %v662
      %v664 = vpop.xlane.xlu0 %663
      %v665 = vsel %vm259, %v651, -inf
      %666 = vmax.xlane.f32.xlu0 %v665
      %v667 = vpop.xlane.xlu0 %666
      %v668 = vsel %vm259, %v652, -inf
      %669 = vmax.xlane.f32.xlu0 %v668
      %v670 = vpop.xlane.xlu0 %669
      %v671 = vsel %vm259, %v653, -inf
      %672 = vmax.xlane.f32.xlu0 %v671
      %v673 = vpop.xlane.xlu0 %672
      %v674 = vsel %vm259, %v654, -inf
      %675 = vmax.xlane.f32.xlu0 %v674
      %v676 = vpop.xlane.xlu0 %675
      %v677 = vsel %vm259, %v655, -inf
      %678 = vmax.xlane.f32.xlu0 %v677
      %v679 = vpop.xlane.xlu0 %678
      %v680 = vsub.f32 %v648, %v658
      %v681 = vsub.f32 %v649, %v661
      %v682 = vsub.f32 %v650, %v664
      %v683 = vsub.f32 %v651, %v667
      %v684 = vsub.f32 %v652, %v670
      %v685 = vsub.f32 %v653, %v673
      %v686 = vsub.f32 %v654, %v676
      %v687 = vsub.f32 %v655, %v679
      %v688 = vmul.f32 %v680, 1.442695
      %v689 = vpow.pop %v688
      %v690 = vmul.f32 %v681, 1.442695
      %v691 = vpow.pop %v690
      %v692 = vmul.f32 %v682, 1.442695
      %v693 = vpow.pop %v692
      %v694 = vmul.f32 %v683, 1.442695
      %v695 = vpow.pop %v694
      %v696 = vmul.f32 %v684, 1.442695
      %v697 = vpow.pop %v696
      %v698 = vmul.f32 %v685, 1.442695
      %v699 = vpow.pop %v698
      %v700 = vmul.f32 %v686, 1.442695
      %v701 = vpow.pop %v700
      %v702 = vmul.f32 %v687, 1.442695
      %v703 = vpow.pop %v702
      %v704 = vsel %vm259, %v689, 0.0
      %705 = vadd.xlane.f32.xlu0 %v704
      %v706 = vpop.xlane.xlu0 %705
      %v707 = vsel %vm259, %v691, 0.0
      %708 = vadd.xlane.f32.xlu0 %v707
      %v709 = vpop.xlane.xlu0 %708
      %v710 = vsel %vm259, %v693, 0.0
      %711 = vadd.xlane.f32.xlu0 %v710
      %v712 = vpop.xlane.xlu0 %711
      %v713 = vsel %vm259, %v695, 0.0
      %714 = vadd.xlane.f32.xlu0 %v713
      %v715 = vpop.xlane.xlu0 %714
      %v716 = vsel %vm259, %v697, 0.0
      %717 = vadd.xlane.f32.xlu0 %v716
      %v718 = vpop.xlane.xlu0 %717
      %v719 = vsel %vm259, %v699, 0.0
      %720 = vadd.xlane.f32.xlu0 %v719
      %v721 = vpop.xlane.xlu0 %720
      %v722 = vsel %vm259, %v701, 0.0
      %723 = vadd.xlane.f32.xlu0 %v722
      %v724 = vpop.xlane.xlu0 %723
      %v725 = vsel %vm259, %v703, 0.0
      %726 = vadd.xlane.f32.xlu0 %v725
      %v727 = vpop.xlane.xlu0 %726
      %v728 = vrcp.pop %v706
      %v729 = vrcp.pop %v709
      %v730 = vrcp.pop %v712
      %v731 = vrcp.pop %v715
      %v732 = vrcp.pop %v718
      %v733 = vrcp.pop %v721
      %v734 = vrcp.pop %v724
      %v735 = vrcp.pop %v727
      %v736 = vmul.f32 %v689, %v728
      %v737 = vmul.f32 %v691, %v729
      %v738 = vmul.f32 %v693, %v730
      %v739 = vmul.f32 %v695, %v731
      %v740 = vmul.f32 %v697, %v732
      %v741 = vmul.f32 %v699, %v733
      %v742 = vmul.f32 %v701, %v734
      %v743 = vmul.f32 %v703, %v735
      %v744 = vpack.c.bf16 %v737, %v736
      %v745 = vpack.c.bf16 %v739, %v738
      %v746 = vpack.c.bf16 %v741, %v740
      %v747 = vpack.c.bf16 %v743, %v742
      %v748 = vpack.c.bf16 %v504, %v501
      %v749 = vpack.c.bf16 %v512, %v509
      %v750 = vpack.c.bf16 %v520, %v517
      %v751 = vpack.c.bf16 %v528, %v525
      %v753 = vsel %vm259, %v744, 0
      %v756 = vsel %vm259, %v745, 0
      %v759 = vsel %vm259, %v746, 0
      %v762 = vsel %vm259, %v747, 0
      %764 = vmatprep.subr.bf16.mxu0 0
      %765 = vmatpush1.bf16.msra.mxu0 %v748
      %766 = vmatprep.subr.bf16.mxu0 0
      %767 = vmatpush1.bf16.msra.mxu0 %v749
      %768 = vmatprep.subr.bf16.mxu0 0
      %769 = vmatpush1.bf16.msra.mxu0 %v750
      %770 = vmatprep.subr.bf16.mxu0 0
      %771 = vmatpush1.bf16.msra.mxu0 %v751
      %772 = vmatprep.subr.bf16.mxu0 0
      %773 = vmatpush1.bf16.msra.mxu0 0
      %774 = vmatprep.subr.bf16.mxu0 0
      %775 = vmatpush1.bf16.msra.mxu0 0
      %776 = vmatprep.subr.bf16.mxu0 0
      %777 = vmatpush1.bf16.msra.mxu0 0
      %778 = vmatprep.subr.bf16.mxu0 0
      %779 = vmatpush1.bf16.msra.mxu0 0
      %780 = vmatprep.subr.bf16.mxu0 0
      %781 = vmatpush1.bf16.msra.mxu0 0
      %782 = vmatprep.subr.bf16.mxu0 0
      %783 = vmatpush1.bf16.msra.mxu0 0
      %784 = vmatprep.subr.bf16.mxu0 0
      %785 = vmatpush1.bf16.msra.mxu0 0
      %786 = vmatprep.subr.bf16.mxu0 0
      %787 = vmatpush1.bf16.msra.mxu0 0
      %788 = vmatprep.subr.bf16.mxu0 0
      %789 = vmatpush1.bf16.msra.mxu0 0
      %790 = vmatprep.subr.bf16.mxu0 0
      %791 = vmatpush1.bf16.msra.mxu0 0
      %792 = vmatprep.subr.bf16.mxu0 0
      %793 = vmatpush1.bf16.msra.mxu0 0
      %794 = vmatprep.subr.bf16.mxu0 0
      %795 = vmatpush1.bf16.msra.mxu0 0
      %796 = vmatprep.mubr.bf16.mxu0 0
      %797 = vmatmul.mubr.bf16.gmra.mrb[0].mxu0 %v753
      %v798 = vpop.f32.mrb[0].mxu0
      %v799 = vadd.f32 0.0, %v798
      %v800 = vpop.f32.mrb[0].mxu0
      %v801 = vpop.f32.mrb[0].mxu0
      %v802 = vadd.f32 0.0, %v801
      %v803 = vpop.f32.mrb[0].mxu0
      %804 = vmatprep.mubr.bf16.mxu0 0
      %805 = vmatmul.mubr.bf16.gmra.mrb[0].mxu0 %v756
      %v806 = vpop.f32.mrb[0].mxu0
      %v807 = vadd.f32 0.0, %v806
      %v808 = vpop.f32.mrb[0].mxu0
      %v809 = vpop.f32.mrb[0].mxu0
      %v810 = vadd.f32 0.0, %v809
      %v811 = vpop.f32.mrb[0].mxu0
      %812 = vmatprep.mubr.bf16.mxu0 0
      %813 = vmatmul.mubr.bf16.gmra.mrb[0].mxu0 %v759
      %v814 = vpop.f32.mrb[0].mxu0
      %v815 = vadd.f32 0.0, %v814
      %v816 = vpop.f32.mrb[0].mxu0
      %v817 = vpop.f32.mrb[0].mxu0
      %v818 = vadd.f32 0.0, %v817
      %v819 = vpop.f32.mrb[0].mxu0
      %820 = vmatprep.mubr.bf16.mxu0 0
      %821 = vmatmul.mubr.bf16.gmra.mrb[0].mxu0 %v762
      %v822 = vpop.f32.mrb[0].mxu0
      %v823 = vadd.f32 0.0, %v822
      %v824 = vpop.f32.mrb[0].mxu0
      %v825 = vpop.f32.mrb[0].mxu0
      %v826 = vadd.f32 0.0, %v825
      %v827 = vpop.f32.mrb[0].mxu0
      %828 = vdwg.mxu0
      %829 = vst.msk [vmem:[%s197] sm:$0xff] %vm539, %v799
      %830 = vst.msk [vmem:[%s197 + $0x8] sm:$0xff] %vm539, %v802
      %831 = vst.msk [vmem:[%s197 + $0x10] sm:$0xff] %vm539, %v807
      %832 = vst.msk [vmem:[%s197 + $0x18] sm:$0xff] %vm539, %v810
      %833 = vst.msk [vmem:[%s197 + $0x20] sm:$0xff] %vm539, %v815
      %834 = vst.msk [vmem:[%s197 + $0x28] sm:$0xff] %vm539, %v818
      %835 = vst.msk [vmem:[%s197 + $0x30] sm:$0xff] %vm539, %v823
      %836 = vst.msk [vmem:[%s197 + $0x38] sm:$0xff] %vm539, %v826
      %p837 = scmp.lt.s32.totalorder %s15, 1
      %s838 = scalar_select %p837, %s15, 1
      %s839 = smul.addr %s838, 8
      %s840 = smul.addr %s839, 8
      %s841 = scalar_lea.vmem %s4, %s840
      // Predicated region
      $region37: #{tpu_custom_call.1} parent=35 // pred_check
        %p842 = pneg %p122
      $region38: #{tpu_custom_call.1} parent=35 // pred_check_branch
        %844 = sbr.rel (%p842) target = $region40
      $region39: #{tpu_custom_call.1} parent=35 // pred_region
        _
      $region40: #{tpu_custom_call.1} parent=35 // pred_fallthru
        _
    $region36: #{tpu_custom_call.1} parent=5 // pred_fallthru
      _
    %p845 = scmp.le.s32.totalorder 2, %s10
    // Predicated region
    $region41: #{tpu_custom_call.1} parent=5 // pred_check
      %p846 = pneg %p845
    $region42: #{tpu_custom_call.1} parent=5 // pred_check_branch
      %848 = sbr.rel (%p846) target = $region44
    $region43: #{tpu_custom_call.1} parent=5 // pred_region
      %s849 = ssub.s32 %s10, 2
      // Predicated region
      $region45: #{tpu_custom_call.1} parent=43 // pred_check
        %p850 = pneg %p128
      $region46: #{tpu_custom_call.1} parent=43 // pred_check_branch
        %852 = sbr.rel (%p850) target = $region48
      $region47: #{tpu_custom_call.1} parent=43 // pred_region
        %p853 = scmp.lt.s32.totalorder %s16, 1
        %s854 = scalar_select %p853, %s16, 1
        %s855 = smul.addr %s854, 8
        %s856 = smul.addr %s855, 8
        %s857 = scalar_lea.vmem %s4, %s856
      $region48: #{tpu_custom_call.1} parent=43 // pred_fallthru
        _
    $region44: #{tpu_custom_call.1} parent=5 // pred_fallthru
      _
  $region6: #{tpu_custom_call.1} parent=0 // loop_footer
    %s14 = sadd.s32 1, %s10
  $region7: #{tpu_custom_call.1} parent=0 // loop_footer_branch
    %9 = sbr.rel target = $region3
  $region8: #{tpu_custom_call.1} parent=0 // loop_exit
    _

</llo_original>
